<compile_context>
chip_gen: v7x
topology: tpu7x:2x2x1
jax: 0.10.0
libtpu: 0.0.40
codegen_flags: <defaults>
</compile_context>

<pallas_src>
import functools
import math

import jax
import jax.numpy as jnp
from jax.experimental import pallas as pl
from jax.experimental.pallas import tpu as pltpu

_PAR = getattr(pltpu, "PARALLEL", "parallel")
_ARB = getattr(pltpu, "ARBITRARY", "arbitrary")
_CORE_PAR = getattr(pltpu, "CORE_PARALLEL", None)


def sinusoidal_pe(seq_len: int, dim: int) -> jnp.ndarray:
    """Standard sinusoidal positional encoding, shape (1, L, D), float32."""
    pos = jnp.arange(seq_len, dtype=jnp.float32)[:, None]                  # (L, 1)
    div = jnp.exp(
        jnp.arange(0, dim, 2, dtype=jnp.float32) * (-math.log(10000.0) / dim)
    )                                                                       # (ceil(D/2),)
    ang = pos * div                                                         # (L, ceil(D/2))
    pe = jnp.zeros((seq_len, dim), dtype=jnp.float32)
    pe = pe.at[:, 0::2].set(jnp.sin(ang))
    pe = pe.at[:, 1::2].set(jnp.cos(ang)[:, : dim // 2])                    # odd-D safe
    return pe[None]                                                         # (1, L, D)


def _tpu_vmem_and_cores():
    """(physical VMEM bytes, TensorCores per chip) with conservative fallbacks."""
    vmem = 64 * 1024 * 1024   # conservative (v7x-level) default if query fails
    cores = 1
    try:
        info = pltpu.get_tpu_info()
        vmem = int(getattr(info, "vmem_capacity_bytes", vmem))
        cores = int(
            getattr(info, "num_cores", 0)
            or getattr(info, "tensorcore_count", 0)
            or (2 if vmem <= 96 * 1024 * 1024 else 1)   # 64 MiB VMEM -> v7x-like, 2 TCs
        )
    except Exception:
        pass
    return vmem, cores


# ---------------------------------------------------------------------------- kernels


def _embdim_nomask_kernel(x_ref, peb_ref, o_ref, *, scale):
    """x_ref/peb_ref/o_ref: (1, TL, Dv)."""
    o_ref[...] = (x_ref[...] * scale + peb_ref[...]).astype(o_ref.dtype)


def _embdim_masked_kernel(x_ref, peb_ref, mask_ref, o_ref, *, scale):
    """x_ref/peb_ref/o_ref: (1, TL, D); mask_ref: (1, TL, 1) 0/1 multiplier in x.dtype."""
    y = x_ref[...] * scale + peb_ref[...]
    o_ref[...] = (y * mask_ref[...]).astype(o_ref.dtype)


def _embdim_masked_packed_kernel(x_ref, peb_ref, mask_ref, expand_ref, o_ref, *, scale):
    """Lane-packed masked path.

    x_ref/peb_ref/o_ref: (1, TL, k*D); mask_ref: (1, TL, k) 0/1; expand_ref: (k, k*D)
    selector with expand[i, c] = 1 iff c // D == i, so mask @ expand replicates each
    position's mask across its D lanes -> lane-dense multiply & 128-wide stores.
    """
    y = x_ref[...] * scale + peb_ref[...]
    m = jnp.dot(mask_ref[0], expand_ref[...], preferred_element_type=jnp.float32)
    o_ref[...] = (y * m[None].astype(y.dtype)).astype(o_ref.dtype)


# ---------------------------------------------------------------------------- helpers


def _choose_seq_tile(num_rows, row_bytes, budget_bytes, sublane):
    """Largest sublane-aligned sequence tile whose double-buffered streams fit budget."""
    tl = max(1, budget_bytes // max(row_bytes, 1))
    if tl >= num_rows:
        return num_rows
    tl = (tl // sublane) * sublane
    if tl < 8:                       # degenerate (enormous Dv): smallest legal tile
        tl = min(8, num_rows)
    return min(tl, num_rows)


def _call_with_fallback(kernel_fn, *, out_shape, grid, in_specs, out_specs, args,
                        sems, vmem_limit, cost):
    """Try preferred dimension_semantics (e.g. CORE_PARALLEL on v7x), fall back."""
    err = None
    for s in sems:
        try:
            return pl.pallas_call(
                kernel_fn,
                out_shape=out_shape,
                grid=grid,
                in_specs=in_specs,
                out_specs=out_specs,
                compiler_params=pltpu.CompilerParams(
                    dimension_semantics=s, vmem_limit_bytes=vmem_limit),
                cost_estimate=cost,
            )(*args)
        except Exception as e:   # keep robustness across TPU generations
            err = e
    raise err


# ---------------------------------------------------------------------------- wrapper


def embdim_forward(x, t: int, type_emb_table, mask=None):
    """Pallas implementation of EMBDim.forward (posTYPE='REL', drop=0.0).

    x:              (B, L, D) float array
    t:              python int in {0, 1} (static; mirrors `if t == 1 / t == 0` branching)
    type_emb_table: (2, D) float array  (nn.Embedding(2, dim).weight)
    mask:           optional (B, L); positions with mask == 0 are zeroed
    """
    B, L, D = x.shape
    scale = math.sqrt(float(D))
    itemsize = jnp.dtype(x.dtype).itemsize
    sublane = max(8, 32 // max(itemsize, 1))          # 8 f32 / 16 bf16 / 32 int8

    vmem_bytes, cores = _tpu_vmem_and_cores()
    if vmem_bytes >= 100 * 1024 * 1024:               # v5e / v6e: 128 MiB physical VMEM
        budget, vmem_limit = 40 * 1024 * 1024, 64 * 1024 * 1024
    else:                                             # v7x: 64 MiB physical per TC
        budget, vmem_limit = 20 * 1024 * 1024, 48 * 1024 * 1024

    # Fold type embedding into the positional encoding once, in the wrapper.
    pe_bias = (
        sinusoidal_pe(L, D) + scale * type_emb_table[t][None, None, :]
    ).astype(x.dtype)                                                       # (1, L, D)

    # Lane-dense fold: k consecutive positions into the lane dim so the minor dim of
    # every stream is a multiple of 128 (unmasked vld/vst).  k = lcm(D,128)/D.
    k = 128 // math.gcd(D, 128)
    fold = k > 1 and L % k == 0
    if fold:
        Lv, Dv = L // k, k * D
        x_v = x.reshape(B, Lv, Dv)
        pe_v = pe_bias.reshape(1, Lv, Dv)
    else:
        k, Lv, Dv = 1, L, D
        x_v, pe_v = x, pe_bias

    def _sems(num_l):
        sems = []
        if _CORE_PAR is not None and cores >= 2:
            if num_l >= cores:
                sems.append((_CORE_PAR, _ARB))        # shard L tiles across TCs
            elif B >= cores:
                sems.append((_PAR, _CORE_PAR))        # shard batch across TCs
        sems.append((_PAR, _ARB))                     # portable fallback
        return sems

    def _specs(tl):
        x_spec = pl.BlockSpec((1, tl, Dv), lambda l, b: (b, l, 0))
        pe_spec = pl.BlockSpec((1, tl, Dv), lambda l, b: (0, l, 0))  # ignores b: resident
        out_spec = pl.BlockSpec((1, tl, Dv), lambda l, b: (b, l, 0))
        return x_spec, pe_spec, out_spec

    flops = 3 * B * L * D
    bytes_accessed = (2 * B * L * D + L * D) * itemsize

    # ---------------- unmasked path ----------------
    if mask is None:
        row_bytes = 3 * 2 * Dv * itemsize             # x, pe, out; x2 double-buffering
        tl = _choose_seq_tile(Lv, row_bytes, budget, sublane)
        num_l = pl.cdiv(Lv, tl)
        x_spec, pe_spec, out_spec = _specs(tl)
        out = _call_with_fallback(
            functools.partial(_embdim_nomask_kernel, scale=scale),
            out_shape=jax.ShapeDtypeStruct((B, Lv, Dv), x.dtype),
            grid=(num_l, B),
            in_specs=[x_spec, pe_spec],
            out_specs=out_spec,
            args=(x_v, pe_v),
            sems=_sems(num_l),
            vmem_limit=vmem_limit,
            cost=pl.CostEstimate(flops=flops, transcendentals=0,
                                 bytes_accessed=bytes_accessed),
        )
        return out.reshape(B, L, D)

    # ---------------- masked path ----------------
    mask01 = mask.astype(x.dtype)                     # 0/1 multiplier, smallest DMA stream

    if fold:
        mask_v = mask01.reshape(B, Lv, k)
        # selector E[i, c] = 1 iff c // D == i  (tiny, VMEM-resident)
        col = jnp.arange(Dv, dtype=jnp.int32)[None, :] // D
        row = jnp.arange(k, dtype=jnp.int32)[:, None]
        expand = (col == row).astype(x.dtype)         # (k, Dv)

        row_bytes = (3 * Dv + k) * 2 * itemsize
        tl = _choose_seq_tile(Lv, row_bytes, budget, sublane)
        num_l = pl.cdiv(Lv, tl)
        x_spec, pe_spec, out_spec = _specs(tl)
        mask_spec = pl.BlockSpec((1, tl, k), lambda l, b: (b, l, 0))
        exp_spec = pl.BlockSpec((k, Dv), lambda l, b: (0, 0))       # resident
        try:
            out = _call_with_fallback(
                functools.partial(_embdim_masked_packed_kernel, scale=scale),
                out_shape=jax.ShapeDtypeStruct((B, Lv, Dv), x.dtype),
                grid=(num_l, B),
                in_specs=[x_spec, pe_spec, mask_spec, exp_spec],
                out_specs=out_spec,
                args=(x_v, pe_v, mask_v, expand),
                sems=_sems(num_l),
                vmem_limit=vmem_limit,
                cost=pl.CostEstimate(flops=flops + 2 * B * L * D, transcendentals=0,
                                     bytes_accessed=bytes_accessed + B * L * itemsize),
            )
            return out.reshape(B, L, D)
        except Exception:
            pass  # fall back to the unpacked masked path below

    # Unpacked masked path: D already a multiple of 128 (lane-dense anyway),
    # L not foldable, or packed-path fallback.
    mask_u = mask01.reshape(B, L, 1)
    row_bytes = (3 * D + 1) * 2 * itemsize
    tl = _choose_seq_tile(L, row_bytes, budget, sublane)
    num_l = pl.cdiv(L, tl)
    x_spec = pl.BlockSpec((1, tl, D), lambda l, b: (b, l, 0))
    pe_spec = pl.BlockSpec((1, tl, D), lambda l, b: (0, l, 0))
    out_spec = pl.BlockSpec((1, tl, D), lambda l, b: (b, l, 0))
    mask_spec = pl.BlockSpec((1, tl, 1), lambda l, b: (b, l, 0))
    out = _call_with_fallback(
        functools.partial(_embdim_masked_kernel, scale=scale),
        out_shape=jax.ShapeDtypeStruct((B, L, D), x.dtype),
        grid=(num_l, B),
        in_specs=[x_spec, pe_spec, mask_spec],
        out_specs=out_spec,
        args=(x, pe_bias, mask_u),
        sems=_sems(num_l),
        vmem_limit=vmem_limit,
        cost=pl.CostEstimate(flops=flops, transcendentals=0,
                             bytes_accessed=bytes_accessed + B * L * itemsize),
    )
    return out


def embdim_reference(x, t, type_emb_table, mask=None):
    """Plain-JAX reference mirroring the PyTorch forward."""
    B, L, D = x.shape
    img = x + type_emb_table[t][None, None, :]
    y = img * math.sqrt(float(D)) + sinusoidal_pe(L, D)
    if mask is not None:
        y = jnp.where(mask[:, :, None] == 0, 0.0, y)
    return y


if __name__ == "__main__":
    key = jax.random.PRNGKey(0)
    k_x, k_emb, k_mask = jax.random.split(key, 3)

    B, L, D = 2, 8, 32  # batch, seq, hidden

    x = jax.random.normal(k_x, (B, L, D), dtype=jnp.float32)
    # nn.Embedding(2, dim) default init ~ N(0, 1), deterministic here:
    type_emb_table = jax.random.normal(k_emb, (2, D), dtype=jnp.float32)
    mask = (jax.random.uniform(k_mask, (B, L)) > 0.2).astype(jnp.int32)

    # t = 1, with mask (lane-packed masked path).
    out = jax.block_until_ready(embdim_forward(x, 1, type_emb_table, mask=mask))
    ref = embdim_reference(x, 1, type_emb_table, mask=mask)
    assert out.shape == (B, L, D)
    assert jnp.allclose(out, ref, atol=1e-5, rtol=1e-5)

    # t = 0, no mask (lane-packed unmasked path).
    out0 = jax.block_until_ready(embdim_forward(x, 0, type_emb_table, mask=None))
    ref0 = embdim_reference(x, 0, type_emb_table, mask=None)
    assert out0.shape == (B, L, D)
    assert jnp.allclose(out0, ref0, atol=1e-5, rtol=1e-5)

    print("KERNEL_OK")
</pallas_src>

<mosaic_0001>
module attributes {stable_mosaic.version = 11 : i64} {
  func.func @_embdim_masked_packed_kernel(%arg0: i32, %arg1: i32, %arg2: memref<1x2x128xf32, #tpu.memory_space<vmem>>, %arg3: memref<1x2x128xf32, #tpu.memory_space<vmem>>, %arg4: memref<1x2x4xf32, #tpu.memory_space<vmem>>, %arg5: memref<4x128xf32, #tpu.memory_space<vmem>>, %arg6: memref<1x2x128xf32, #tpu.memory_space<vmem>>) attributes {dimension_semantics = [#tpu.dimension_semantics<parallel>, #tpu.dimension_semantics<arbitrary>], iteration_bounds = array<i64: 1, 2>, scalar_prefetch = 0 : i64, scratch_operands = 0 : i64, tpu.core_type = #tpu.core_type<tc>, window_params = [{transform_indices = @transform_0, window_bounds = array<i64: 1, 2, 128>}, {transform_indices = @transform_1, window_bounds = array<i64: 1, 2, 128>}, {transform_indices = @transform_2, window_bounds = array<i64: 1, 2, 4>}, {pipeline_mode = #tpu.pipeline_mode<synchronous>, transform_indices = @transform_3, window_bounds = array<i64: 4, 128>}, {transform_indices = @transform_4, window_bounds = array<i64: 1, 2, 128>}]} {
    %c0 = arith.constant 0 : index
    %c0_0 = arith.constant 0 : index
    %c0_1 = arith.constant 0 : index
    %0 = vector.load %arg2[%c0, %c0_0, %c0_1] : memref<1x2x128xf32, #tpu.memory_space<vmem>>, vector<1x2x128xf32>
    %cst = arith.constant 5.65685415 : f32
    %1 = vector.broadcast %cst : f32 to vector<1x2x128xf32>
    %2 = arith.mulf %0, %1 : vector<1x2x128xf32>
    %c0_2 = arith.constant 0 : index
    %c0_3 = arith.constant 0 : index
    %c0_4 = arith.constant 0 : index
    %3 = vector.load %arg3[%c0_2, %c0_3, %c0_4] : memref<1x2x128xf32, #tpu.memory_space<vmem>>, vector<1x2x128xf32>
    %4 = arith.addf %2, %3 : vector<1x2x128xf32>
    %c0_5 = arith.constant 0 : index
    %c0_6 = arith.constant 0 : index
    %c0_7 = arith.constant 0 : index
    %5 = vector.load %arg4[%c0_5, %c0_6, %c0_7] : memref<1x2x4xf32, #tpu.memory_space<vmem>>, vector<1x2x4xf32>
    %6 = vector.shape_cast %5 : vector<1x2x4xf32> to vector<2x4xf32>
    %c0_8 = arith.constant 0 : index
    %c0_9 = arith.constant 0 : index
    %7 = vector.load %arg5[%c0_8, %c0_9] : memref<4x128xf32, #tpu.memory_space<vmem>>, vector<4x128xf32>
    %cst_10 = arith.constant dense<0.000000e+00> : vector<2x128xf32>
    %8 = tpu.matmul %6, %7, %cst_10 {dimension_numbers = #tpu.dot_dimension_numbers<[1], [0], [0], [1], [0, 0, 1, 1], [], []>} : vector<2x4xf32>, vector<4x128xf32>, vector<2x128xf32> -> vector<2x128xf32>
    %9 = vector.shape_cast %8 : vector<2x128xf32> to vector<1x2x128xf32>
    %10 = arith.mulf %4, %9 : vector<1x2x128xf32>
    %c0_11 = arith.constant 0 : index
    %c0_12 = arith.constant 0 : index
    %c0_13 = arith.constant 0 : index
    %11 = vector.load %arg6[%c0_11, %c0_12, %c0_13] : memref<1x2x128xf32, #tpu.memory_space<vmem>>, vector<1x2x128xf32>
    tpu.vector_store %arg6[%c0_11, %c0_12, %c0_13], %10 {strides = array<i32>} : memref<1x2x128xf32, #tpu.memory_space<vmem>>, vector<1x2x128xf32>,
    return
  }
  func.func @transform_0(%arg0: i32, %arg1: i32) -> (i32, i32, i32) {
    %c0_i32 = arith.constant 0 : i32
    %c0_i32_0 = arith.constant 0 : i32
    return %arg1, %arg0, %c0_i32 : i32, i32, i32
  }
  func.func @transform_1(%arg0: i32, %arg1: i32) -> (i32, i32, i32) {
    %c0_i32 = arith.constant 0 : i32
    %c0_i32_0 = arith.constant 0 : i32
    %c0_i32_1 = arith.constant 0 : i32
    return %c0_i32, %arg0, %c0_i32_0 : i32, i32, i32
  }
  func.func @transform_2(%arg0: i32, %arg1: i32) -> (i32, i32, i32) {
    %c0_i32 = arith.constant 0 : i32
    %c0_i32_0 = arith.constant 0 : i32
    return %arg1, %arg0, %c0_i32 : i32, i32, i32
  }
  func.func @transform_3(%arg0: i32, %arg1: i32) -> (i32, i32) {
    %c0_i32 = arith.constant 0 : i32
    %c0_i32_0 = arith.constant 0 : i32
    %c0_i32_1 = arith.constant 0 : i32
    return %c0_i32, %c0_i32_0 : i32, i32
  }
  func.func @transform_4(%arg0: i32, %arg1: i32) -> (i32, i32, i32) {
    %c0_i32 = arith.constant 0 : i32
    %c0_i32_0 = arith.constant 0 : i32
    return %arg1, %arg0, %c0_i32 : i32, i32, i32
  }
}

module attributes {stable_mosaic.version = 11 : i64} {
  func.func @_embdim_masked_kernel(%arg0: i32, %arg1: i32, %arg2: memref<1x8x32xf32, #tpu.memory_space<vmem>>, %arg3: memref<1x8x32xf32, #tpu.memory_space<vmem>>, %arg4: memref<1x8x1xf32, #tpu.memory_space<vmem>>, %arg5: memref<1x8x32xf32, #tpu.memory_space<vmem>>) attributes {dimension_semantics = [#tpu.dimension_semantics<parallel>, #tpu.dimension_semantics<arbitrary>], iteration_bounds = array<i64: 1, 2>, scalar_prefetch = 0 : i64, scratch_operands = 0 : i64, tpu.core_type = #tpu.core_type<tc>, window_params = [{transform_indices = @transform_0, window_bounds = array<i64: 1, 8, 32>}, {transform_indices = @transform_1, window_bounds = array<i64: 1, 8, 32>}, {transform_indices = @transform_2, window_bounds = array<i64: 1, 8, 1>}, {transform_indices = @transform_3, window_bounds = array<i64: 1, 8, 32>}]} {
    %c0 = arith.constant 0 : index
    %c0_0 = arith.constant 0 : index
    %c0_1 = arith.constant 0 : index
    %0 = vector.load %arg2[%c0, %c0_0, %c0_1] : memref<1x8x32xf32, #tpu.memory_space<vmem>>, vector<1x8x32xf32>
    %cst = arith.constant 5.65685415 : f32
    %1 = vector.broadcast %cst : f32 to vector<1x8x32xf32>
    %2 = arith.mulf %0, %1 : vector<1x8x32xf32>
    %c0_2 = arith.constant 0 : index
    %c0_3 = arith.constant 0 : index
    %c0_4 = arith.constant 0 : index
    %3 = vector.load %arg3[%c0_2, %c0_3, %c0_4] : memref<1x8x32xf32, #tpu.memory_space<vmem>>, vector<1x8x32xf32>
    %4 = arith.addf %2, %3 : vector<1x8x32xf32>
    %c0_5 = arith.constant 0 : index
    %c0_6 = arith.constant 0 : index
    %c0_7 = arith.constant 0 : index
    %5 = vector.load %arg4[%c0_5, %c0_6, %c0_7] : memref<1x8x1xf32, #tpu.memory_space<vmem>>, vector<1x8x1xf32>
    %6 = vector.broadcast %5 : vector<1x8x1xf32> to vector<1x8x32xf32>
    %7 = arith.mulf %4, %6 : vector<1x8x32xf32>
    %c0_8 = arith.constant 0 : index
    %c0_9 = arith.constant 0 : index
    %c0_10 = arith.constant 0 : index
    %8 = vector.load %arg5[%c0_8, %c0_9, %c0_10] : memref<1x8x32xf32, #tpu.memory_space<vmem>>, vector<1x8x32xf32>
    tpu.vector_store %arg5[%c0_8, %c0_9, %c0_10], %7 {strides = array<i32>} : memref<1x8x32xf32, #tpu.memory_space<vmem>>, vector<1x8x32xf32>,
    return
  }
  func.func @transform_0(%arg0: i32, %arg1: i32) -> (i32, i32, i32) {
    %c0_i32 = arith.constant 0 : i32
    %c0_i32_0 = arith.constant 0 : i32
    return %arg1, %arg0, %c0_i32 : i32, i32, i32
  }
  func.func @transform_1(%arg0: i32, %arg1: i32) -> (i32, i32, i32) {
    %c0_i32 = arith.constant 0 : i32
    %c0_i32_0 = arith.constant 0 : i32
    %c0_i32_1 = arith.constant 0 : i32
    return %c0_i32, %arg0, %c0_i32_0 : i32, i32, i32
  }
  func.func @transform_2(%arg0: i32, %arg1: i32) -> (i32, i32, i32) {
    %c0_i32 = arith.constant 0 : i32
    %c0_i32_0 = arith.constant 0 : i32
    return %arg1, %arg0, %c0_i32 : i32, i32, i32
  }
  func.func @transform_3(%arg0: i32, %arg1: i32) -> (i32, i32, i32) {
    %c0_i32 = arith.constant 0 : i32
    %c0_i32_0 = arith.constant 0 : i32
    return %arg1, %arg0, %c0_i32 : i32, i32, i32
  }
}

</mosaic_0001>

<llo_original>
// kernel: tpu_custom_call.1
$region0: #{tpu_custom_call.1}
  #allocation0 [shape = 'u32[]', space=smem, size = 0x4, offset = 0x4, fixed_abs, tag = 'smem constant byte address 0x4 - core index']
  #allocation1 [shape = 'u32[144,128]{1,0:T(1,128)}', space=vmem, size = 0x12000, scoped, tag = 'internal scratch']
  %s0 = inlined_call_operand.hbm [shape: f32[2,2,128], index: 0, kind: input, shape index: {}]
  %s1 = inlined_call_operand.vmem [shape: f32[1,2,128], index: 1, kind: input, shape index: {}]
  %s2 = inlined_call_operand.vmem [shape: f32[2,2,4], index: 2, kind: input, shape index: {}]
  %s3 = inlined_call_operand.vmem [shape: f32[4,128], index: 3, kind: input, shape index: {}]
  %s4 = inlined_call_operand.hbm [shape: f32[2,2,128], index: 4, kind: output, shape index: {}]
  %s5 = sld [smem:[#allocation0]]
  $region53: #{tpu_custom_call.1} parent=0
    _
  %s7 = ssub.s32 1, %s5
  %s8 = scalar_select 0, %s7, %s5
  $region1: #{tpu_custom_call.1} parent=0
    #allocation2 [shape = 'u8[2048]{0}', space=vmem, size = 0x800, scoped, tag = 'input window, operand 0']
    #allocation3 [shape = 's32[2]{0}', space=sflag, size = 0x8, scoped, tag = 'scoped memory for tpu_custom_call.1']
    #allocation4 [shape = 's32[2]{0}', space=sflag, size = 0x8, scoped, tag = 'scoped memory for tpu_custom_call.1']
    #allocation5 [shape = 'u8[2048]{0}', space=vmem, size = 0x800, scoped, tag = 'output window, operand 0']
    %9 = vsyncpa [#allocation3], 0
    %s10 = scalar_lea.sflag [#allocation3], 1
    %11 = vsyncpa %s10, 0
    %12 = vsyncpa [#allocation4], 0
    %s13 = scalar_lea.sflag [#allocation4], 1
    %14 = vsyncpa %s13, 0
    loop: start=0, step=1, limit=4
    $region2: #{tpu_custom_call.1} parent=1 // loop_pre_header
      _
    $region3: #{tpu_custom_call.1} parent=1 // loop_header
      %s16 = sphi 0, %s20
      %p17 = scmp.ge.s32.totalorder %s16, 4
      %s23 = sphi 0, %s35
      %s24 = sphi 0, %s31
      %s25 = sphi 0, %s23
      %s26 = sphi 0, %s24
      %s27 = sphi 0, %s25
      %s28 = sphi 0, %s26
      %s40 = sphi 0, %s42
      %s43 = sphi 0, %s40
      %s44 = sphi 0, %s43
      %s60 = sphi 0, %s44
      %s66 = sphi 0, %s68
      %s69 = sphi 0, %s66
      %s70 = sphi 0, %s69
      %s86 = sphi 0, %s70
      %s94 = sphi 0, %s96
      %s97 = sphi 0, %s94
      %s98 = sphi 0, %s97
      %s114 = sphi 0, %s98
      %s118 = sphi 0, %s118
      %s120 = sphi 0, %s118
      %s121 = sphi 0, %s120
      %s135 = sphi 0, %s121
      %s143 = sphi 0, %s145
      %s146 = sphi 0, %s143
      %s147 = sphi 0, %s146
      %s163 = sphi 0, %s147
    $region4: #{tpu_custom_call.1} parent=1 // loop_header_branch
      %19 = sbr.rel (%p17) target = $region8
    $region5: #{tpu_custom_call.1} parent=1 // loop_body
      %s21 = ssub.s32 %s16, 1
      %s22 = ssub.s32 %s16, 2
      %s29 = sadd.s32 1, %s24
      %p30 = scmp.ge.s32.totalorder %s29, 2
      %s31 = scalar_select %p30, 0, %s29
      %s32 = sadd.s32 1, %s23
      %s33 = scalar_select %p30, %s32, %s23
      %p34 = scmp.ge.s32.totalorder %s33, 1
      %s35 = scalar_select %p34, 0, %s33
      %s36 = ssub.s32 %s24, %s31
      %s37 = ssub.s32 %s23, %s35
      %s38 = sor.u32 %s36, %s37
      %p39 = scmp.eq.s32.totalorder %s38, 0
      %s41 = sadd.s32 %s40, 1
      %s42 = scalar_select %p39, %s40, %s41
      %p45 = pneg %p39
      %p46 = scmp.eq.s32.totalorder %s16, 1
      %p47 = por %p45, %p46
      %p48 = scmp.ne.s32.totalorder %s40, %s43
      %p49 = scmp.eq.s32.totalorder %s16, 0
      %p50 = por %p48, %p49
      %p51 = scmp.ne.s32.totalorder %s40, %s43
      %p52 = scmp.eq.s32.totalorder %s21, 1
      %p53 = por %p51, %p52
      %p54 = scmp.ne.s32.totalorder %s43, %s44
      %p55 = scmp.eq.s32.totalorder %s21, 0
      %p56 = por %p54, %p55
      %p57 = scmp.ne.s32.totalorder %s43, %s44
      %p58 = scmp.eq.s32.totalorder %s22, 1
      %p59 = por %p57, %p58
      %p61 = scmp.ne.s32.totalorder %s44, %s60
      %p62 = scmp.eq.s32.totalorder %s22, 0
      %p63 = por %p61, %p62
      %s64 = ssub.s32 %s23, %s35
      %p65 = scmp.eq.s32.totalorder %s64, 0
      %s67 = sadd.s32 %s66, 1
      %s68 = scalar_select %p65, %s66, %s67
      %p71 = pneg %p65
      %p72 = scmp.eq.s32.totalorder %s16, 1
      %p73 = por %p71, %p72
      %p74 = scmp.ne.s32.totalorder %s66, %s69
      %p75 = scmp.eq.s32.totalorder %s16, 0
      %p76 = por %p74, %p75
      %p77 = scmp.ne.s32.totalorder %s66, %s69
      %p78 = scmp.eq.s32.totalorder %s21, 1
      %p79 = por %p77, %p78
      %p80 = scmp.ne.s32.totalorder %s69, %s70
      %p81 = scmp.eq.s32.totalorder %s21, 0
      %p82 = por %p80, %p81
      %p83 = scmp.ne.s32.totalorder %s69, %s70
      %p84 = scmp.eq.s32.totalorder %s22, 1
      %p85 = por %p83, %p84
      %p87 = scmp.ne.s32.totalorder %s70, %s86
      %p88 = scmp.eq.s32.totalorder %s22, 0
      %p89 = por %p87, %p88
      %s90 = ssub.s32 %s24, %s31
      %s91 = ssub.s32 %s23, %s35
      %s92 = sor.u32 %s90, %s91
      %p93 = scmp.eq.s32.totalorder %s92, 0
      %s95 = sadd.s32 %s94, 1
      %s96 = scalar_select %p93, %s94, %s95
      %p99 = pneg %p93
      %p100 = scmp.eq.s32.totalorder %s16, 1
      %p101 = por %p99, %p100
      %p102 = scmp.ne.s32.totalorder %s94, %s97
      %p103 = scmp.eq.s32.totalorder %s16, 0
      %p104 = por %p102, %p103
      %p105 = scmp.ne.s32.totalorder %s94, %s97
      %p106 = scmp.eq.s32.totalorder %s21, 1
      %p107 = por %p105, %p106
      %p108 = scmp.ne.s32.totalorder %s97, %s98
      %p109 = scmp.eq.s32.totalorder %s21, 0
      %p110 = por %p108, %p109
      %p111 = scmp.ne.s32.totalorder %s97, %s98
      %p112 = scmp.eq.s32.totalorder %s22, 1
      %p113 = por %p111, %p112
      %p115 = scmp.ne.s32.totalorder %s98, %s114
      %p116 = scmp.eq.s32.totalorder %s22, 0
      %p117 = por %p115, %p116
      %s119 = sadd.s32 %s118, 1
      %p122 = scmp.eq.s32.totalorder %s16, 1
      %p123 = scmp.ne.s32.totalorder %s118, %s120
      %p124 = scmp.eq.s32.totalorder %s16, 0
      %p125 = por %p123, %p124
      %p126 = scmp.ne.s32.totalorder %s118, %s120
      %p127 = scmp.eq.s32.totalorder %s21, 1
      %p128 = por %p126, %p127
      %p129 = scmp.ne.s32.totalorder %s120, %s121
      %p130 = scmp.eq.s32.totalorder %s21, 0
      %p131 = por %p129, %p130
      %p132 = scmp.ne.s32.totalorder %s120, %s121
      %p133 = scmp.eq.s32.totalorder %s22, 1
      %p134 = por %p132, %p133
      %p136 = scmp.ne.s32.totalorder %s121, %s135
      %p137 = scmp.eq.s32.totalorder %s22, 0
      %p138 = por %p136, %p137
      %s139 = ssub.s32 %s24, %s31
      %s140 = ssub.s32 %s23, %s35
      %s141 = sor.u32 %s139, %s140
      %p142 = scmp.eq.s32.totalorder %s141, 0
      %s144 = sadd.s32 %s143, 1
      %s145 = scalar_select %p142, %s143, %s144
      %p148 = pneg %p142
      %p149 = scmp.eq.s32.totalorder %s16, 1
      %p150 = por %p148, %p149
      %p151 = scmp.ne.s32.totalorder %s143, %s146
      %p152 = scmp.eq.s32.totalorder %s16, 0
      %p153 = por %p151, %p152
      %p154 = scmp.ne.s32.totalorder %s143, %s146
      %p155 = scmp.eq.s32.totalorder %s21, 1
      %p156 = por %p154, %p155
      %p157 = scmp.ne.s32.totalorder %s146, %s147
      %p158 = scmp.eq.s32.totalorder %s21, 0
      %p159 = por %p157, %p158
      %p160 = scmp.ne.s32.totalorder %s146, %s147
      %p161 = scmp.eq.s32.totalorder %s22, 1
      %p162 = por %p160, %p161
      %p164 = scmp.ne.s32.totalorder %s147, %s163
      %p165 = scmp.eq.s32.totalorder %s22, 0
      %p166 = por %p164, %p165
      %p167 = scmp.le.s32.totalorder 1, %s16
      %p168 = scmp.lt.s32.totalorder %s16, 3
      %p169 = pnand %p167, %p168
      %p170 = pneg %p169
      // Predicated region
      $region9: #{tpu_custom_call.1} parent=5 // pred_check
        _
      $region10: #{tpu_custom_call.1} parent=5 // pred_check_branch
        %172 = sbr.rel (%p169) target = $region12
      $region11: #{tpu_custom_call.1} parent=5 // pred_region
        %s173 = ssub.s32 %s16, 1
        // Predicated region
        $region13: #{tpu_custom_call.1} parent=11 // pred_check
          %p174 = pneg %p82
        $region14: #{tpu_custom_call.1} parent=11 // pred_check_branch
          %176 = sbr.rel (%p174) target = $region16
        $region15: #{tpu_custom_call.1} parent=11 // pred_region
          %p177 = scmp.lt.s32.totalorder %s25, 0
          %s178 = scalar_select %p177, %s25, 0
          %s179 = smul.addr %s178, 2
          %s180 = scalar_lea.vmem %s1, %s179
        $region16: #{tpu_custom_call.1} parent=11 // pred_fallthru
          _
        // Predicated region
        $region17: #{tpu_custom_call.1} parent=11 // pred_check
          %p181 = pneg %p131
        $region18: #{tpu_custom_call.1} parent=11 // pred_check_branch
          %183 = sbr.rel (%p181) target = $region20
        $region19: #{tpu_custom_call.1} parent=11 // pred_region
          _
        $region20: #{tpu_custom_call.1} parent=11 // pred_fallthru
          _
      $region12: #{tpu_custom_call.1} parent=5 // pred_fallthru
        _
      %p184 = scmp.lt.s32.totalorder %s16, 2
      // Predicated region
      $region21: #{tpu_custom_call.1} parent=5 // pred_check
        %p185 = pneg %p184
      $region22: #{tpu_custom_call.1} parent=5 // pred_check_branch
        %187 = sbr.rel (%p185) target = $region24
      $region23: #{tpu_custom_call.1} parent=5 // pred_region
        // Predicated region
        $region25: #{tpu_custom_call.1} parent=23 // pred_check
          %p188 = pneg %p50
        $region26: #{tpu_custom_call.1} parent=23 // pred_check_branch
          %190 = sbr.rel (%p188) target = $region28
        $region27: #{tpu_custom_call.1} parent=23 // pred_region
          %s191 = sand.u32 %s40, 1
          %s192 = scalar_lea.sflag [#allocation3], %s191
          %s193 = sand.u32 %s40, 1
          %s194 = smul.addr %s193, 2
          %s195 = scalar_lea.vmem [#allocation2], %s194
          %s197 = ssub.s32 32, 32
          %198 = vsyncadd %s192, %s197
          %s199 = sadd.s32 %s23, %s24
          %s200 = smul.addr %s199, 32
          %s201 = scalar_lea.hbm %s0, %s200
          %s203 = sshll.u32 %s195, 4
          %s204 = int_to_ptr.vmem [resolvable:$true] %s203
          %206 = dma.hbm_to_vmem [thread:$0]  %s201, 32, %s204, %s192
        $region28: #{tpu_custom_call.1} parent=23 // pred_fallthru
          _
        // Predicated region
        $region29: #{tpu_custom_call.1} parent=23 // pred_check
          %p207 = pneg %p104
        $region30: #{tpu_custom_call.1} parent=23 // pred_check_branch
          %209 = sbr.rel (%p207) target = $region32
        $region31: #{tpu_custom_call.1} parent=23 // pred_region
          %p210 = scmp.lt.s32.totalorder %s24, 1
          %s211 = scalar_select %p210, %s24, 1
          %p212 = scmp.lt.s32.totalorder %s23, 0
          %s213 = scalar_select %p212, %s23, 0
          %s214 = sadd.s32 %s213, %s211
          %s215 = smul.addr %s214, 2
          %s216 = scalar_lea.vmem %s2, %s215
        $region32: #{tpu_custom_call.1} parent=23 // pred_fallthru
          _
      $region24: #{tpu_custom_call.1} parent=5 // pred_fallthru
        _
      %p217 = scmp.le.s32.totalorder 1, %s16
      %p218 = scmp.lt.s32.totalorder %s16, 3
      %p219 = pnand %p217, %p218
      %p220 = pneg %p219
      // Predicated region
      $region33: #{tpu_custom_call.1} parent=5 // pred_check
        _
      $region34: #{tpu_custom_call.1} parent=5 // pred_check_branch
        %222 = sbr.rel (%p219) target = $region36
      $region35: #{tpu_custom_call.1} parent=5 // pred_region
        %s223 = ssub.s32 %s16, 1
        %s224 = sand.u32 %s43, 1
        %s225 = scalar_lea.sflag [#allocation3], %s224
        %s226 = sand.u32 %s43, 1
        %s227 = smul.addr %s226, 2
        %s228 = scalar_lea.vmem [#allocation2], %s227
        // Predicated region
        $region37: #{tpu_custom_call.1} parent=35 // pred_check
          %p229 = pneg %p56
        $region38: #{tpu_custom_call.1} parent=35 // pred_check_branch
          %231 = sbr.rel (%p229) target = $region40
        $region39: #{tpu_custom_call.1} parent=35 // pred_region
          %232 = dma.done %s225, 32
        $region40: #{tpu_custom_call.1} parent=35 // pred_fallthru
          _
        %s233 = sand.u32 %s43, 1
        %s234 = scalar_lea.sflag [#allocation3], %s233
        %s235 = sand.u32 %s43, 1
        %s236 = smul.addr %s235, 2
        %s237 = scalar_lea.vmem [#allocation2], %s236
        %p238 = pneg %p56
        %p239 = pneg %p53
        %p240 = scmp.lt.s32.totalorder %s25, 0
        %s241 = scalar_select %p240, %s25, 0
        %s242 = smul.addr %s241, 2
        %s243 = scalar_lea.vmem %s1, %s242
        %p244 = pneg %p82
        %p245 = pneg %p79
        %p246 = scmp.lt.s32.totalorder %s26, 1
        %s247 = scalar_select %p246, %s26, 1
        %p248 = scmp.lt.s32.totalorder %s25, 0
        %s249 = scalar_select %p248, %s25, 0
        %s250 = sadd.s32 %s249, %s247
        %s251 = smul.addr %s250, 2
        %s252 = scalar_lea.vmem %s2, %s251
        %p253 = pneg %p110
        %p254 = pneg %p107
        %p255 = pneg %p131
        %p256 = pneg %p128
        %p257 = pneg %p159
        %p258 = pneg %p156
        %s259 = sand.u32 %s146, 1
        %s260 = scalar_lea.sflag [#allocation4], %s259
        %s261 = sand.u32 %s146, 1
        %s262 = smul.addr %s261, 2
        %s263 = scalar_lea.vmem [#allocation5], %s262
        %p264 = scmp.lt.s32.totalorder %s25, 0
        %s265 = scalar_select %p264, %s25, 0
        %s266 = smul.addr %s265, 2
        %s267 = scalar_lea.vmem %s1, %s266
        %p268 = scmp.lt.s32.totalorder %s26, 1
        %s269 = scalar_select %p268, %s26, 1
        %p270 = scmp.lt.s32.totalorder %s25, 0
        %s271 = scalar_select %p270, %s25, 0
        %s272 = sadd.s32 %s271, %s269
        %s273 = smul.addr %s272, 2
        %s274 = scalar_lea.vmem %s2, %s273
        %v275 = vld [vmem:[%s228] sm:$0x3]
        %v276 = vmul.f32 %v275, 5.656854
        %v277 = vld [vmem:[%s267] sm:$0x3]
        %v278 = vadd.f32 %v276, %v277
        %v279 = vld [vmem:[%s274] sm:$0x3]
        %v280 = vld [vmem:[%s3] sm:$0xf]
        %vm281 = vcmask 31744
        %v283 = vsel %vm281, %v279, 0
        %vm285 = vcmask 1043456
        %v287 = vsel %vm285, %v280, 0
        %289 = vmatprep.subr.mxu0 0.0
        %290 = vmatpush1.msra.mxu0 %v287
        %291 = vmatprep.subr.mxu0 0.0
        %292 = vmatpush1.msra.mxu0 0.0
        %293 = vmatprep.subr.mxu0 0.0
        %294 = vmatpush1.msra.mxu0 0.0
        %295 = vmatprep.subr.mxu0 0.0
        %296 = vmatpush1.msra.mxu0 0.0
        %297 = vmatprep.subr.mxu0 0.0
        %298 = vmatpush1.msra.mxu0 0.0
        %299 = vmatprep.subr.mxu0 0.0
        %300 = vmatpush1.msra.mxu0 0.0
        %301 = vmatprep.subr.mxu0 0.0
        %302 = vmatpush1.msra.mxu0 0.0
        %303 = vmatprep.subr.mxu0 0.0
        %304 = vmatpush1.msra.mxu0 0.0
        %305 = vmatprep.subr.mxu0 0.0
        %306 = vmatpush1.msra.mxu0 0.0
        %307 = vmatprep.subr.mxu0 0.0
        %308 = vmatpush1.msra.mxu0 0.0
        %309 = vmatprep.subr.mxu0 0.0
        %310 = vmatpush1.msra.mxu0 0.0
        %311 = vmatprep.subr.mxu0 0.0
        %312 = vmatpush1.msra.mxu0 0.0
        %313 = vmatprep.subr.mxu0 0.0
        %314 = vmatpush1.msra.mxu0 0.0
        %315 = vmatprep.subr.mxu0 0.0
        %316 = vmatpush1.msra.mxu0 0.0
        %317 = vmatprep.subr.mxu0 0.0
        %318 = vmatpush1.msra.mxu0 0.0
        %319 = vmatprep.subr.mxu0 0.0
        %320 = vmatpush1.msra.mxu0 0.0
        %321 = vmatprep.subr.mxu0 0.0
        %322 = vmatpush1.msra.mxu0 0.0
        %323 = vmatprep.subr.mxu0 0.0
        %324 = vmatpush1.msra.mxu0 0.0
        %325 = vmatprep.subr.mxu0 0.0
        %326 = vmatpush1.msra.mxu0 0.0
        %327 = vmatprep.subr.mxu0 0.0
        %328 = vmatpush1.msra.mxu0 0.0
        %329 = vmatprep.subr.mxu0 0.0
        %330 = vmatpush1.msra.mxu0 0.0
        %331 = vmatprep.subr.mxu0 0.0
        %332 = vmatpush1.msra.mxu0 0.0
        %333 = vmatprep.subr.mxu0 0.0
        %334 = vmatpush1.msra.mxu0 0.0
        %335 = vmatprep.subr.mxu0 0.0
        %336 = vmatpush1.msra.mxu0 0.0
        %337 = vmatprep.subr.mxu0 0.0
        %338 = vmatpush1.msra.mxu0 0.0
        %339 = vmatprep.subr.mxu0 0.0
        %340 = vmatpush1.msra.mxu0 0.0
        %341 = vmatprep.subr.mxu0 0.0
        %342 = vmatpush1.msra.mxu0 0.0
        %343 = vmatprep.subr.mxu0 0.0
        %344 = vmatpush1.msra.mxu0 0.0
        %345 = vmatprep.subr.mxu0 0.0
        %346 = vmatpush1.msra.mxu0 0.0
        %347 = vmatprep.subr.mxu0 0.0
        %348 = vmatpush1.msra.mxu0 0.0
        %349 = vmatprep.subr.mxu0 0.0
        %350 = vmatpush1.msra.mxu0 0.0
        %351 = vmatprep.subr.mxu0 0.0
        %352 = vmatpush1.msra.mxu0 0.0
        %353 = vmatprep.mubr.f32.mxu0 0.0
        %354 = vmatmul.mubr.f32.gmra.mrb[0].mxu0 %v283
        %v355 = vpop.f32.mrb[0].mxu0
        %v356 = vadd.f32 0.0, %v355
        %v357 = vpop.f32.mrb[0].mxu0
        %358 = vdwg.mxu0
        %v359 = vmul.f32 %v278, %v356
        %360 = vst [vmem:[%s263] sm:$0x3] %v359
        %s361 = sand.u32 %s146, 1
        %s362 = scalar_lea.sflag [#allocation4], %s361
        %s363 = sand.u32 %s146, 1
        %s364 = smul.addr %s363, 2
        %s365 = scalar_lea.vmem [#allocation5], %s364
        // Predicated region
        $region41: #{tpu_custom_call.1} parent=35 // pred_check
          %p366 = pneg %p156
        $region42: #{tpu_custom_call.1} parent=35 // pred_check_branch
          %368 = sbr.rel (%p366) target = $region44
        $region43: #{tpu_custom_call.1} parent=35 // pred_region
          %s370 = ssub.s32 32, 32
          %371 = vsyncadd %s362, %s370
          %s372 = sadd.s32 %s25, %s26
          %s373 = smul.addr %s372, 32
          %s374 = scalar_lea.hbm %s4, %s373
          %s376 = sshll.u32 %s365, 4
          %s377 = int_to_ptr.vmem [resolvable:$true] %s376
          %379 = dma.vmem_to_hbm [thread:$0]  %s377, 32, %s374, %s362
        $region44: #{tpu_custom_call.1} parent=35 // pred_fallthru
          _
      $region36: #{tpu_custom_call.1} parent=5 // pred_fallthru
        _
      %p380 = scmp.le.s32.totalorder 2, %s16
      // Predicated region
      $region45: #{tpu_custom_call.1} parent=5 // pred_check
        %p381 = pneg %p380
      $region46: #{tpu_custom_call.1} parent=5 // pred_check_branch
        %383 = sbr.rel (%p381) target = $region48
      $region47: #{tpu_custom_call.1} parent=5 // pred_region
        %s384 = ssub.s32 %s16, 2
        // Predicated region
        $region49: #{tpu_custom_call.1} parent=47 // pred_check
          %p385 = pneg %p162
        $region50: #{tpu_custom_call.1} parent=47 // pred_check_branch
          %387 = sbr.rel (%p385) target = $region52
        $region51: #{tpu_custom_call.1} parent=47 // pred_region
          %s388 = sand.u32 %s147, 1
          %s389 = scalar_lea.sflag [#allocation4], %s388
          %s390 = sand.u32 %s147, 1
          %s391 = smul.addr %s390, 2
          %s392 = scalar_lea.vmem [#allocation5], %s391
          %393 = dma.done %s389, 32
        $region52: #{tpu_custom_call.1} parent=47 // pred_fallthru
          _
      $region48: #{tpu_custom_call.1} parent=5 // pred_fallthru
        _
    $region6: #{tpu_custom_call.1} parent=1 // loop_footer
      %s20 = sadd.s32 1, %s16
    $region7: #{tpu_custom_call.1} parent=1 // loop_footer_branch
      %15 = sbr.rel target = $region3
    $region8: #{tpu_custom_call.1} parent=1 // loop_exit
      _
    %394 = vsyncpa [#allocation3], 1
    %s395 = scalar_lea.sflag [#allocation3], 1
    %396 = vsyncpa %s395, 1
    %397 = vsyncpa [#allocation4], 1
    %s398 = scalar_lea.sflag [#allocation4], 1
    %399 = vsyncpa %s398, 1

// kernel: tpu_custom_call.1
$region0: #{tpu_custom_call.1}
  #allocation0 [shape = 'u32[]', space=smem, size = 0x4, offset = 0x4, fixed_abs, tag = 'smem constant byte address 0x4 - core index']
  #allocation1 [shape = 'u32[144,128]{1,0:T(1,128)}', space=vmem, size = 0x12000, scoped, tag = 'internal scratch']
  %s0 = inlined_call_operand.vmem [shape: f32[2,8,32], index: 0, kind: input, shape index: {}]
  %s1 = inlined_call_operand.hbm [shape: f32[1,8,32], index: 1, kind: input, shape index: {}]
  %s2 = inlined_call_operand.vmem [shape: f32[2,8,1], index: 2, kind: input, shape index: {}]
  %s3 = inlined_call_operand.hbm [shape: f32[2,8,32], index: 3, kind: output, shape index: {}]
  %s4 = sld [smem:[#allocation0]]
  $region49: #{tpu_custom_call.1} parent=0
    _
  %s6 = ssub.s32 1, %s4
  %s7 = scalar_select 0, %s6, %s4
  $region1: #{tpu_custom_call.1} parent=0
    #allocation2 [shape = 'u8[4096]{0}', space=vmem, size = 0x1000, scoped, tag = 'input window, operand 1, single buffered']
    #allocation3 [shape = 's32[2]{0}', space=sflag, size = 0x8, scoped, tag = 'scoped memory for tpu_custom_call.1']
    #allocation4 [shape = 's32[2]{0}', space=sflag, size = 0x8, scoped, tag = 'scoped memory for tpu_custom_call.1']
    #allocation5 [shape = 'u8[8192]{0}', space=vmem, size = 0x2000, scoped, tag = 'output window, operand 0']
    %8 = vsyncpa [#allocation3], 0
    %9 = vsyncpa [#allocation4], 0
    %s10 = scalar_lea.sflag [#allocation4], 1
    %11 = vsyncpa %s10, 0
    loop: start=0, step=1, limit=4
    $region2: #{tpu_custom_call.1} parent=1 // loop_pre_header
      _
    $region3: #{tpu_custom_call.1} parent=1 // loop_header
      %s13 = sphi 0, %s17
      %p14 = scmp.ge.s32.totalorder %s13, 4
      %s20 = sphi 0, %s32
      %s21 = sphi 0, %s28
      %s22 = sphi 0, %s20
      %s23 = sphi 0, %s21
      %s24 = sphi 0, %s22
      %s25 = sphi 0, %s23
      %s37 = sphi 0, %s39
      %s40 = sphi 0, %s37
      %s41 = sphi 0, %s40
      %s57 = sphi 0, %s41
      %s63 = sphi 0, %s65
      %s66 = sphi 0, %s63
      %s67 = sphi 0, %s66
      %s83 = sphi 0, %s67
      %s91 = sphi 0, %s93
      %s94 = sphi 0, %s91
      %s95 = sphi 0, %s94
      %s111 = sphi 0, %s95
      %s119 = sphi 0, %s121
      %s122 = sphi 0, %s119
      %s123 = sphi 0, %s122
      %s139 = sphi 0, %s123
    $region4: #{tpu_custom_call.1} parent=1 // loop_header_branch
      %16 = sbr.rel (%p14) target = $region8
    $region5: #{tpu_custom_call.1} parent=1 // loop_body
      %s18 = ssub.s32 %s13, 1
      %s19 = ssub.s32 %s13, 2
      %s26 = sadd.s32 1, %s21
      %p27 = scmp.ge.s32.totalorder %s26, 2
      %s28 = scalar_select %p27, 0, %s26
      %s29 = sadd.s32 1, %s20
      %s30 = scalar_select %p27, %s29, %s20
      %p31 = scmp.ge.s32.totalorder %s30, 1
      %s32 = scalar_select %p31, 0, %s30
      %s33 = ssub.s32 %s21, %s28
      %s34 = ssub.s32 %s20, %s32
      %s35 = sor.u32 %s33, %s34
      %p36 = scmp.eq.s32.totalorder %s35, 0
      %s38 = sadd.s32 %s37, 1
      %s39 = scalar_select %p36, %s37, %s38
      %p42 = pneg %p36
      %p43 = scmp.eq.s32.totalorder %s13, 1
      %p44 = por %p42, %p43
      %p45 = scmp.ne.s32.totalorder %s37, %s40
      %p46 = scmp.eq.s32.totalorder %s13, 0
      %p47 = por %p45, %p46
      %p48 = scmp.ne.s32.totalorder %s37, %s40
      %p49 = scmp.eq.s32.totalorder %s18, 1
      %p50 = por %p48, %p49
      %p51 = scmp.ne.s32.totalorder %s40, %s41
      %p52 = scmp.eq.s32.totalorder %s18, 0
      %p53 = por %p51, %p52
      %p54 = scmp.ne.s32.totalorder %s40, %s41
      %p55 = scmp.eq.s32.totalorder %s19, 1
      %p56 = por %p54, %p55
      %p58 = scmp.ne.s32.totalorder %s41, %s57
      %p59 = scmp.eq.s32.totalorder %s19, 0
      %p60 = por %p58, %p59
      %s61 = ssub.s32 %s20, %s32
      %p62 = scmp.eq.s32.totalorder %s61, 0
      %s64 = sadd.s32 %s63, 1
      %s65 = scalar_select %p62, %s63, %s64
      %p68 = pneg %p62
      %p69 = scmp.eq.s32.totalorder %s13, 1
      %p70 = por %p68, %p69
      %p71 = scmp.ne.s32.totalorder %s63, %s66
      %p72 = scmp.eq.s32.totalorder %s13, 0
      %p73 = por %p71, %p72
      %p74 = scmp.ne.s32.totalorder %s63, %s66
      %p75 = scmp.eq.s32.totalorder %s18, 1
      %p76 = por %p74, %p75
      %p77 = scmp.ne.s32.totalorder %s66, %s67
      %p78 = scmp.eq.s32.totalorder %s18, 0
      %p79 = por %p77, %p78
      %p80 = scmp.ne.s32.totalorder %s66, %s67
      %p81 = scmp.eq.s32.totalorder %s19, 1
      %p82 = por %p80, %p81
      %p84 = scmp.ne.s32.totalorder %s67, %s83
      %p85 = scmp.eq.s32.totalorder %s19, 0
      %p86 = por %p84, %p85
      %s87 = ssub.s32 %s21, %s28
      %s88 = ssub.s32 %s20, %s32
      %s89 = sor.u32 %s87, %s88
      %p90 = scmp.eq.s32.totalorder %s89, 0
      %s92 = sadd.s32 %s91, 1
      %s93 = scalar_select %p90, %s91, %s92
      %p96 = pneg %p90
      %p97 = scmp.eq.s32.totalorder %s13, 1
      %p98 = por %p96, %p97
      %p99 = scmp.ne.s32.totalorder %s91, %s94
      %p100 = scmp.eq.s32.totalorder %s13, 0
      %p101 = por %p99, %p100
      %p102 = scmp.ne.s32.totalorder %s91, %s94
      %p103 = scmp.eq.s32.totalorder %s18, 1
      %p104 = por %p102, %p103
      %p105 = scmp.ne.s32.totalorder %s94, %s95
      %p106 = scmp.eq.s32.totalorder %s18, 0
      %p107 = por %p105, %p106
      %p108 = scmp.ne.s32.totalorder %s94, %s95
      %p109 = scmp.eq.s32.totalorder %s19, 1
      %p110 = por %p108, %p109
      %p112 = scmp.ne.s32.totalorder %s95, %s111
      %p113 = scmp.eq.s32.totalorder %s19, 0
      %p114 = por %p112, %p113
      %s115 = ssub.s32 %s21, %s28
      %s116 = ssub.s32 %s20, %s32
      %s117 = sor.u32 %s115, %s116
      %p118 = scmp.eq.s32.totalorder %s117, 0
      %s120 = sadd.s32 %s119, 1
      %s121 = scalar_select %p118, %s119, %s120
      %p124 = pneg %p118
      %p125 = scmp.eq.s32.totalorder %s13, 1
      %p126 = por %p124, %p125
      %p127 = scmp.ne.s32.totalorder %s119, %s122
      %p128 = scmp.eq.s32.totalorder %s13, 0
      %p129 = por %p127, %p128
      %p130 = scmp.ne.s32.totalorder %s119, %s122
      %p131 = scmp.eq.s32.totalorder %s18, 1
      %p132 = por %p130, %p131
      %p133 = scmp.ne.s32.totalorder %s122, %s123
      %p134 = scmp.eq.s32.totalorder %s18, 0
      %p135 = por %p133, %p134
      %p136 = scmp.ne.s32.totalorder %s122, %s123
      %p137 = scmp.eq.s32.totalorder %s19, 1
      %p138 = por %p136, %p137
      %p140 = scmp.ne.s32.totalorder %s123, %s139
      %p141 = scmp.eq.s32.totalorder %s19, 0
      %p142 = por %p140, %p141
      %p143 = scmp.le.s32.totalorder 1, %s13
      %p144 = scmp.lt.s32.totalorder %s13, 3
      %p145 = pnand %p143, %p144
      %p146 = pneg %p145
      // Predicated region
      $region9: #{tpu_custom_call.1} parent=5 // pred_check
        _
      $region10: #{tpu_custom_call.1} parent=5 // pred_check_branch
        %148 = sbr.rel (%p145) target = $region12
      $region11: #{tpu_custom_call.1} parent=5 // pred_region
        %s149 = ssub.s32 %s13, 1
        // Predicated region
        $region13: #{tpu_custom_call.1} parent=11 // pred_check
          %p150 = pneg %p79
        $region14: #{tpu_custom_call.1} parent=11 // pred_check_branch
          %152 = sbr.rel (%p150) target = $region16
        $region15: #{tpu_custom_call.1} parent=11 // pred_region
          %s154 = ssub.s32 128, 128
          %155 = vsyncadd [#allocation3], %s154
          %s156 = smul.addr %s22, 128
          %s157 = scalar_lea.hbm %s1, %s156
          %s159 = sshll.u32 [#allocation2], 4
          %s160 = int_to_ptr.vmem [resolvable:$true] %s159
          %162 = dma.hbm_to_vmem [thread:$0]  %s157, 128, %s160, [#allocation3]
        $region16: #{tpu_custom_call.1} parent=11 // pred_fallthru
          _
      $region12: #{tpu_custom_call.1} parent=5 // pred_fallthru
        _
      %p163 = scmp.lt.s32.totalorder %s13, 2
      // Predicated region
      $region17: #{tpu_custom_call.1} parent=5 // pred_check
        %p164 = pneg %p163
      $region18: #{tpu_custom_call.1} parent=5 // pred_check_branch
        %166 = sbr.rel (%p164) target = $region20
      $region19: #{tpu_custom_call.1} parent=5 // pred_region
        // Predicated region
        $region21: #{tpu_custom_call.1} parent=19 // pred_check
          %p167 = pneg %p47
        $region22: #{tpu_custom_call.1} parent=19 // pred_check_branch
          %169 = sbr.rel (%p167) target = $region24
        $region23: #{tpu_custom_call.1} parent=19 // pred_region
          %p170 = scmp.lt.s32.totalorder %s21, 1
          %s171 = scalar_select %p170, %s21, 1
          %p172 = scmp.lt.s32.totalorder %s20, 0
          %s173 = scalar_select %p172, %s20, 0
          %s174 = sadd.s32 %s173, %s171
          %s175 = smul.addr %s174, 8
          %s176 = scalar_lea.vmem %s0, %s175
        $region24: #{tpu_custom_call.1} parent=19 // pred_fallthru
          _
        // Predicated region
        $region25: #{tpu_custom_call.1} parent=19 // pred_check
          %p177 = pneg %p101
        $region26: #{tpu_custom_call.1} parent=19 // pred_check_branch
          %179 = sbr.rel (%p177) target = $region28
        $region27: #{tpu_custom_call.1} parent=19 // pred_region
          %p180 = scmp.lt.s32.totalorder %s21, 1
          %s181 = scalar_select %p180, %s21, 1
          %p182 = scmp.lt.s32.totalorder %s20, 0
          %s183 = scalar_select %p182, %s20, 0
          %s184 = sadd.s32 %s183, %s181
          %s185 = smul.addr %s184, 8
          %s186 = scalar_lea.vmem %s2, %s185
        $region28: #{tpu_custom_call.1} parent=19 // pred_fallthru
          _
      $region20: #{tpu_custom_call.1} parent=5 // pred_fallthru
        _
      %p187 = scmp.le.s32.totalorder 1, %s13
      %p188 = scmp.lt.s32.totalorder %s13, 3
      %p189 = pnand %p187, %p188
      %p190 = pneg %p189
      // Predicated region
      $region29: #{tpu_custom_call.1} parent=5 // pred_check
        _
      $region30: #{tpu_custom_call.1} parent=5 // pred_check_branch
        %192 = sbr.rel (%p189) target = $region32
      $region31: #{tpu_custom_call.1} parent=5 // pred_region
        %s193 = ssub.s32 %s13, 1
        // Predicated region
        $region33: #{tpu_custom_call.1} parent=31 // pred_check
          %p194 = pneg %p79
        $region34: #{tpu_custom_call.1} parent=31 // pred_check_branch
          %196 = sbr.rel (%p194) target = $region36
        $region35: #{tpu_custom_call.1} parent=31 // pred_region
          %197 = dma.done [#allocation3], 128
        $region36: #{tpu_custom_call.1} parent=31 // pred_fallthru
          _
        %p198 = scmp.lt.s32.totalorder %s23, 1
        %s199 = scalar_select %p198, %s23, 1
        %p200 = scmp.lt.s32.totalorder %s22, 0
        %s201 = scalar_select %p200, %s22, 0
        %s202 = sadd.s32 %s201, %s199
        %s203 = smul.addr %s202, 8
        %s204 = scalar_lea.vmem %s0, %s203
        %p205 = pneg %p53
        %p206 = pneg %p50
        %p207 = pneg %p79
        %p208 = pneg %p76
        %p209 = scmp.lt.s32.totalorder %s23, 1
        %s210 = scalar_select %p209, %s23, 1
        %p211 = scmp.lt.s32.totalorder %s22, 0
        %s212 = scalar_select %p211, %s22, 0
        %s213 = sadd.s32 %s212, %s210
        %s214 = smul.addr %s213, 8
        %s215 = scalar_lea.vmem %s2, %s214
        %p216 = pneg %p107
        %p217 = pneg %p104
        %p218 = pneg %p135
        %p219 = pneg %p132
        %s220 = sand.u32 %s122, 1
        %s221 = scalar_lea.sflag [#allocation4], %s220
        %s222 = sand.u32 %s122, 1
        %s223 = smul.addr %s222, 8
        %s224 = scalar_lea.vmem [#allocation5], %s223
        %p225 = scmp.lt.s32.totalorder %s23, 1
        %s226 = scalar_select %p225, %s23, 1
        %p227 = scmp.lt.s32.totalorder %s22, 0
        %s228 = scalar_select %p227, %s22, 0
        %s229 = sadd.s32 %s228, %s226
        %s230 = smul.addr %s229, 8
        %s231 = scalar_lea.vmem %s0, %s230
        %p232 = scmp.lt.s32.totalorder %s23, 1
        %s233 = scalar_select %p232, %s23, 1
        %p234 = scmp.lt.s32.totalorder %s22, 0
        %s235 = scalar_select %p234, %s22, 0
        %s236 = sadd.s32 %s235, %s233
        %s237 = smul.addr %s236, 8
        %s238 = scalar_lea.vmem %s2, %s237
        %v239 = vld [vmem:[%s231] sm:$0xff]
        %v240 = vmul.f32 %v239, 5.656854
        %v241 = vld [vmem:[#allocation2] sm:$0xff]
        %v242 = vadd.f32 %v240, %v241
        %v243 = vld [vmem:[%s238] sm:$0xff]
        %245 = vset.pattern.permute.xlu0 0
        %246 = vperm.xlu0 %245, %v243
        %v247 = vpop.permute.xlu0 %246
        %v249 = vmul.f32 %v242, %v247
        %vm250 = vcmask 261120
        %251 = vst.msk [vmem:[%s224] sm:$0xff] %vm250, %v249
        %s252 = sand.u32 %s122, 1
        %s253 = scalar_lea.sflag [#allocation4], %s252
        %s254 = sand.u32 %s122, 1
        %s255 = smul.addr %s254, 8
        %s256 = scalar_lea.vmem [#allocation5], %s255
        // Predicated region
        $region37: #{tpu_custom_call.1} parent=31 // pred_check
          %p257 = pneg %p132
        $region38: #{tpu_custom_call.1} parent=31 // pred_check_branch
          %259 = sbr.rel (%p257) target = $region40
        $region39: #{tpu_custom_call.1} parent=31 // pred_region
          %s261 = ssub.s32 128, 128
          %262 = vsyncadd %s253, %s261
          %s263 = sadd.s32 %s22, %s23
          %s264 = smul.addr %s263, 128
          %s265 = scalar_lea.hbm %s3, %s264
          %s267 = sshll.u32 %s256, 4
          %s268 = int_to_ptr.vmem [resolvable:$true] %s267
          %270 = dma.vmem_to_hbm [thread:$0]  %s268, 128, %s265, %s253
        $region40: #{tpu_custom_call.1} parent=31 // pred_fallthru
          _
      $region32: #{tpu_custom_call.1} parent=5 // pred_fallthru
        _
      %p271 = scmp.le.s32.totalorder 2, %s13
      // Predicated region
      $region41: #{tpu_custom_call.1} parent=5 // pred_check
        %p272 = pneg %p271
      $region42: #{tpu_custom_call.1} parent=5 // pred_check_branch
        %274 = sbr.rel (%p272) target = $region44
      $region43: #{tpu_custom_call.1} parent=5 // pred_region
        %s275 = ssub.s32 %s13, 2
        // Predicated region
        $region45: #{tpu_custom_call.1} parent=43 // pred_check
          %p276 = pneg %p138
        $region46: #{tpu_custom_call.1} parent=43 // pred_check_branch
          %278 = sbr.rel (%p276) target = $region48
        $region47: #{tpu_custom_call.1} parent=43 // pred_region
          %s279 = sand.u32 %s123, 1
          %s280 = scalar_lea.sflag [#allocation4], %s279
          %s281 = sand.u32 %s123, 1
          %s282 = smul.addr %s281, 8
          %s283 = scalar_lea.vmem [#allocation5], %s282
          %284 = dma.done %s280, 128
        $region48: #{tpu_custom_call.1} parent=43 // pred_fallthru
          _
      $region44: #{tpu_custom_call.1} parent=5 // pred_fallthru
        _
    $region6: #{tpu_custom_call.1} parent=1 // loop_footer
      %s17 = sadd.s32 1, %s13
    $region7: #{tpu_custom_call.1} parent=1 // loop_footer_branch
      %12 = sbr.rel target = $region3
    $region8: #{tpu_custom_call.1} parent=1 // loop_exit
      _
    %285 = vsyncpa [#allocation3], 1
    %s286 = scalar_lea.sflag [#allocation3], 1
    %287 = vsyncpa %s286, 1
    %288 = vsyncpa [#allocation4], 1
    %s289 = scalar_lea.sflag [#allocation4], 1
    %290 = vsyncpa %s289, 1

</llo_original>
